<compile_context>
chip_gen: v7x
topology: tpu7x:2x2x1
jax: 0.10.0
libtpu: 0.0.40
codegen_flags: <defaults>
</compile_context>

<pallas_src>
import jax
import jax.numpy as jnp
from jax import lax
from jax.experimental import pallas as pl
from jax.experimental.pallas import tpu as pltpu

HIDDEN = 256


def critic_kernel(x_ref, w1_ref, b1_ref, w2_ref, b2_ref, w3_ref, b3_ref, o_ref):
    # fc1 + ReLU  (bf16 MXU inputs, f32 accumulate / epilogue)
    h1 = jnp.dot(x_ref[...], w1_ref[...], preferred_element_type=jnp.float32)
    h1 = jnp.maximum(h1 + b1_ref[...], 0.0)
    # fc2 + ReLU
    h2 = jnp.dot(h1.astype(jnp.bfloat16), w2_ref[...],
                 preferred_element_type=jnp.float32)
    h2 = jnp.maximum(h2 + b2_ref[...], 0.0)
    # fc3 as (1, H) contracted with (TILE_B, H) over H -> (1, TILE_B):
    # lane-dense result, so the store is an unmasked full-lane vst.
    q = lax.dot_general(w3_ref[...], h2, (((1,), (1,)), ((), ())),
                        preferred_element_type=jnp.float32)
    o_ref[...] = (q + b3_ref[0, 0]).astype(o_ref.dtype)


def critic_forward(x, params, *, tile_b=256):
    """x: (B, state_dim) float32 -> (B, 1) float32."""
    w1, b1, w2, b2, w3, b3 = params
    B, state_dim = x.shape
    hidden = w1.shape[1]

    # Cast MXU inputs to bf16 once, outside the kernel; epilogue params stay f32.
    x_bf = x.astype(jnp.bfloat16)
    w1_bf = w1.astype(jnp.bfloat16)
    w2_bf = w2.astype(jnp.bfloat16)
    b1_f = b1.reshape(1, hidden).astype(jnp.float32)
    b2_f = b2.reshape(1, hidden).astype(jnp.float32)
    w3_row = w3.reshape(1, hidden).astype(jnp.float32)   # fc3 weight as a row
    b3_s = b3.reshape(1, 1).astype(jnp.float32)          # scalar -> SMEM

    # Pad batch to a multiple of the tile; padded rows are sliced off below.
    num_tiles = pl.cdiv(B, tile_b)
    b_pad = num_tiles * tile_b
    if b_pad != B:
        x_bf = jnp.pad(x_bf, ((0, b_pad - B), (0, 0)))

    resident = lambda i: (0, 0)   # same block every grid step -> no re-DMA

    flops = 2 * b_pad * (state_dim * hidden + hidden * hidden + hidden)
    bytes_accessed = (b_pad * state_dim * 2                 # x (bf16)
                      + (state_dim + hidden) * hidden * 2   # w1, w2 (bf16)
                      + (3 * hidden + 1) * 4                # b1, b2, w3, b3
                      + b_pad * 4)                          # output (f32)

    out_row = pl.pallas_call(
        critic_kernel,
        out_shape=jax.ShapeDtypeStruct((1, b_pad), jnp.float32),
        grid=(num_tiles,),
        in_specs=[
            pl.BlockSpec((tile_b, state_dim), lambda i: (i, 0)),   # x tile
            pl.BlockSpec((state_dim, hidden), resident),           # w1
            pl.BlockSpec((1, hidden), resident),                   # b1
            pl.BlockSpec((hidden, hidden), resident),              # w2
            pl.BlockSpec((1, hidden), resident),                   # b2
            pl.BlockSpec((1, hidden), resident),                   # w3 row
            pl.BlockSpec(memory_space=pltpu.MemorySpace.SMEM),     # b3 scalar
        ],
        out_specs=pl.BlockSpec((1, tile_b), lambda i: (0, i)),     # lane-dense
        compiler_params=pltpu.CompilerParams(
            dimension_semantics=("parallel",)),
        cost_estimate=pl.CostEstimate(
            flops=flops, transcendentals=0, bytes_accessed=bytes_accessed),
    )(x_bf, w1_bf, b1_f, w2_bf, b2_f, w3_row, b3_s)

    return out_row[0, :B][:, None]


def init_critic_params(key, state_dim, hidden=HIDDEN):
    """Deterministic init matching PyTorch nn.Linear default:
    U(-1/sqrt(fan_in), 1/sqrt(fan_in)) for both weight and bias."""
    ks = jax.random.split(key, 6)

    def linear(kw, kb, fan_in, fan_out):
        bound = 1.0 / jnp.sqrt(fan_in)
        w = jax.random.uniform(kw, (fan_in, fan_out), jnp.float32, -bound, bound)
        b = jax.random.uniform(kb, (1, fan_out), jnp.float32, -bound, bound)
        return w, b

    w1, b1 = linear(ks[0], ks[1], state_dim, hidden)
    w2, b2 = linear(ks[2], ks[3], hidden, hidden)
    w3, b3 = linear(ks[4], ks[5], hidden, 1)
    return (w1, b1, w2, b2, w3, b3)


def critic_reference(x, params, match_kernel_precision=True):
    """Pure-JAX reference of the same forward pass."""
    w1, b1, w2, b2, w3, b3 = params
    if match_kernel_precision:
        # Same bf16-input / f32-accumulate recipe the kernel uses.
        h = jnp.dot(x.astype(jnp.bfloat16), w1.astype(jnp.bfloat16),
                    preferred_element_type=jnp.float32)
        h = jnp.maximum(h + b1, 0.0)
        h = jnp.dot(h.astype(jnp.bfloat16), w2.astype(jnp.bfloat16),
                    preferred_element_type=jnp.float32)
        h = jnp.maximum(h + b2, 0.0)
        return jnp.dot(h, w3, preferred_element_type=jnp.float32) + b3
    h = jnp.maximum(x @ w1 + b1, 0.0)
    h = jnp.maximum(h @ w2 + b2, 0.0)
    return h @ w3 + b3


if __name__ == "__main__":
    key = jax.random.PRNGKey(0)
    k_param, k_x = jax.random.split(key)

    batch = 8
    state_dim = 32

    params = init_critic_params(k_param, state_dim)
    x = jax.random.normal(k_x, (batch, state_dim), dtype=jnp.float32)

    out = jax.jit(critic_forward)(x, params)
    out = jax.block_until_ready(out)

    ref = critic_reference(x, params, match_kernel_precision=True)
    assert out.shape == (batch, 1), out.shape
    assert jnp.allclose(out, ref, atol=1e-3, rtol=1e-3), (
        "mismatch vs matched-precision reference")

    print("KERNEL_OK")
</pallas_src>

<mosaic_0001>
module attributes {stable_mosaic.version = 11 : i64} {
  func.func @critic_kernel(%arg0: i32, %arg1: memref<256x32xbf16, #tpu.memory_space<vmem>>, %arg2: memref<32x256xbf16, #tpu.memory_space<vmem>>, %arg3: memref<1x256xf32, #tpu.memory_space<vmem>>, %arg4: memref<256x256xbf16, #tpu.memory_space<vmem>>, %arg5: memref<1x256xf32, #tpu.memory_space<vmem>>, %arg6: memref<1x256xf32, #tpu.memory_space<vmem>>, %arg7: memref<1x1xf32, #tpu.memory_space<smem>>, %arg8: memref<1x256xf32, #tpu.memory_space<vmem>>) attributes {dimension_semantics = [#tpu.dimension_semantics<parallel>], iteration_bounds = array<i64: 1>, scalar_prefetch = 0 : i64, scratch_operands = 0 : i64, tpu.core_type = #tpu.core_type<tc>, window_params = [{transform_indices = @transform_0, window_bounds = array<i64: 256, 32>}, {pipeline_mode = #tpu.pipeline_mode<synchronous>, transform_indices = @transform_1, window_bounds = array<i64: 32, 256>}, {pipeline_mode = #tpu.pipeline_mode<synchronous>, transform_indices = @transform_2, window_bounds = array<i64: 1, 256>}, {pipeline_mode = #tpu.pipeline_mode<synchronous>, transform_indices = @transform_3, window_bounds = array<i64: 256, 256>}, {pipeline_mode = #tpu.pipeline_mode<synchronous>, transform_indices = @transform_4, window_bounds = array<i64: 1, 256>}, {pipeline_mode = #tpu.pipeline_mode<synchronous>, transform_indices = @transform_5, window_bounds = array<i64: 1, 256>}, {transform_indices = @transform_6, window_bounds = array<i64: 1, 1>}, {transform_indices = @transform_7, window_bounds = array<i64: 1, 256>}]} {
    %c0 = arith.constant 0 : index
    %c0_0 = arith.constant 0 : index
    %0 = vector.load %arg1[%c0, %c0_0] : memref<256x32xbf16, #tpu.memory_space<vmem>>, vector<256x32xbf16>
    %c0_1 = arith.constant 0 : index
    %c0_2 = arith.constant 0 : index
    %1 = vector.load %arg2[%c0_1, %c0_2] : memref<32x256xbf16, #tpu.memory_space<vmem>>, vector<32x256xbf16>
    %cst = arith.constant dense<0.000000e+00> : vector<256x256xf32>
    %2 = tpu.matmul %0, %1, %cst {dimension_numbers = #tpu.dot_dimension_numbers<[1], [0], [0], [1], [0, 0, 1, 1], [], []>} : vector<256x32xbf16>, vector<32x256xbf16>, vector<256x256xf32> -> vector<256x256xf32>
    %c0_3 = arith.constant 0 : index
    %c0_4 = arith.constant 0 : index
    %3 = vector.load %arg3[%c0_3, %c0_4] : memref<1x256xf32, #tpu.memory_space<vmem>>, vector<1x256xf32>
    %4 = vector.broadcast %3 : vector<1x256xf32> to vector<256x256xf32>
    %5 = arith.addf %2, %4 : vector<256x256xf32>
    %cst_5 = arith.constant 0.000000e+00 : f32
    %6 = vector.broadcast %cst_5 : f32 to vector<256x256xf32>
    %7 = arith.maximumf %5, %6 : vector<256x256xf32>
    %8 = arith.truncf %7 : vector<256x256xf32> to vector<256x256xbf16>
    %c0_6 = arith.constant 0 : index
    %c0_7 = arith.constant 0 : index
    %9 = vector.load %arg4[%c0_6, %c0_7] : memref<256x256xbf16, #tpu.memory_space<vmem>>, vector<256x256xbf16>
    %cst_8 = arith.constant dense<0.000000e+00> : vector<256x256xf32>
    %10 = tpu.matmul %8, %9, %cst_8 {dimension_numbers = #tpu.dot_dimension_numbers<[1], [0], [0], [1], [0, 0, 1, 1], [], []>} : vector<256x256xbf16>, vector<256x256xbf16>, vector<256x256xf32> -> vector<256x256xf32>
    %c0_9 = arith.constant 0 : index
    %c0_10 = arith.constant 0 : index
    %11 = vector.load %arg5[%c0_9, %c0_10] : memref<1x256xf32, #tpu.memory_space<vmem>>, vector<1x256xf32>
    %12 = vector.broadcast %11 : vector<1x256xf32> to vector<256x256xf32>
    %13 = arith.addf %10, %12 : vector<256x256xf32>
    %cst_11 = arith.constant 0.000000e+00 : f32
    %14 = vector.broadcast %cst_11 : f32 to vector<256x256xf32>
    %15 = arith.maximumf %13, %14 : vector<256x256xf32>
    %c0_12 = arith.constant 0 : index
    %c0_13 = arith.constant 0 : index
    %16 = vector.load %arg6[%c0_12, %c0_13] : memref<1x256xf32, #tpu.memory_space<vmem>>, vector<1x256xf32>
    %cst_14 = arith.constant dense<0.000000e+00> : vector<1x256xf32>
    %17 = tpu.matmul %16, %15, %cst_14 {dimension_numbers = #tpu.dot_dimension_numbers<[1], [1], [0], [0], [0, 0, 1, 0], [], []>} : vector<1x256xf32>, vector<256x256xf32>, vector<1x256xf32> -> vector<1x256xf32>
    %c0_15 = arith.constant 0 : index
    %c0_16 = arith.constant 0 : index
    %18 = memref.load %arg7[%c0_15, %c0_16] : memref<1x1xf32, #tpu.memory_space<smem>>
    %19 = vector.broadcast %18 : f32 to vector<1x256xf32>
    %20 = arith.addf %17, %19 : vector<1x256xf32>
    %c0_17 = arith.constant 0 : index
    %c0_18 = arith.constant 0 : index
    %21 = vector.load %arg8[%c0_17, %c0_18] : memref<1x256xf32, #tpu.memory_space<vmem>>, vector<1x256xf32>
    tpu.vector_store %arg8[%c0_17, %c0_18], %20 {strides = array<i32>} : memref<1x256xf32, #tpu.memory_space<vmem>>, vector<1x256xf32>,
    return
  }
  func.func @transform_0(%arg0: i32) -> (i32, i32) {
    %c0_i32 = arith.constant 0 : i32
    %c0_i32_0 = arith.constant 0 : i32
    return %arg0, %c0_i32 : i32, i32
  }
  func.func @transform_1(%arg0: i32) -> (i32, i32) {
    %c0_i32 = arith.constant 0 : i32
    %c0_i32_0 = arith.constant 0 : i32
    %c0_i32_1 = arith.constant 0 : i32
    return %c0_i32, %c0_i32_0 : i32, i32
  }
  func.func @transform_2(%arg0: i32) -> (i32, i32) {
    %c0_i32 = arith.constant 0 : i32
    %c0_i32_0 = arith.constant 0 : i32
    %c0_i32_1 = arith.constant 0 : i32
    return %c0_i32, %c0_i32_0 : i32, i32
  }
  func.func @transform_3(%arg0: i32) -> (i32, i32) {
    %c0_i32 = arith.constant 0 : i32
    %c0_i32_0 = arith.constant 0 : i32
    %c0_i32_1 = arith.constant 0 : i32
    return %c0_i32, %c0_i32_0 : i32, i32
  }
  func.func @transform_4(%arg0: i32) -> (i32, i32) {
    %c0_i32 = arith.constant 0 : i32
    %c0_i32_0 = arith.constant 0 : i32
    %c0_i32_1 = arith.constant 0 : i32
    return %c0_i32, %c0_i32_0 : i32, i32
  }
  func.func @transform_5(%arg0: i32) -> (i32, i32) {
    %c0_i32 = arith.constant 0 : i32
    %c0_i32_0 = arith.constant 0 : i32
    %c0_i32_1 = arith.constant 0 : i32
    return %c0_i32, %c0_i32_0 : i32, i32
  }
  func.func @transform_6(%arg0: i32) -> (i32, i32) {
    %c0_i32 = arith.constant 0 : i32
    %c0_i32_0 = arith.constant 0 : i32
    %c0_i32_1 = arith.constant 0 : i32
    return %c0_i32, %c0_i32_0 : i32, i32
  }
  func.func @transform_7(%arg0: i32) -> (i32, i32) {
    %c0_i32 = arith.constant 0 : i32
    %c0_i32_0 = arith.constant 0 : i32
    return %c0_i32, %arg0 : i32, i32
  }
}

</mosaic_0001>

<llo_original>
// kernel: critic_forward.1
$region0: #{critic_forward.1}
  #allocation0 [shape = 'u32[]', space=smem, size = 0x4, offset = 0x4, fixed_abs, tag = 'smem constant byte address 0x4 - core index']
  #allocation1 [shape = 'u32[144,128]{1,0:T(1,128)}', space=vmem, size = 0x12000, scoped, tag = 'internal scratch']
  #allocation2 [shape = 'f32[1,1]{1,0:T(1,128)S(6)}', space=smem, size = 0x200, scoped, tag = 'scoped memory for critic_forward.1']
  %s0 = inlined_call_operand.vmem [shape: bf16[256,32], index: 0, kind: input, shape index: {}]
  %s1 = inlined_call_operand.vmem [shape: bf16[32,256], index: 1, kind: input, shape index: {}]
  %s2 = inlined_call_operand.vmem [shape: f32[1,256], index: 2, kind: input, shape index: {}]
  %s3 = inlined_call_operand.vmem [shape: bf16[256,256], index: 3, kind: input, shape index: {}]
  %s4 = inlined_call_operand.vmem [shape: f32[1,256], index: 4, kind: input, shape index: {}]
  %s5 = inlined_call_operand.vmem [shape: f32[1,256], index: 5, kind: input, shape index: {}]
  %s6 = inlined_call_operand.<no memory space> [shape: f32[1,1], index: 6, kind: input, shape index: {}]
  %s7 = inlined_call_operand.vmem [shape: f32[1,256], index: 7, kind: output, shape index: {}]
  %s8 = sld [smem:[#allocation0]]
  $region38: #{critic_forward.1} parent=0
    _
  %s10 = ssub.s32 1, %s8
  %s11 = scalar_select 0, %s10, %s8
  %12 = sst [smem:[#allocation2]] %s6
  // Predicated region
  $region2: #{critic_forward.1} parent=0 // pred_check
    _
  $region3: #{critic_forward.1} parent=0 // pred_check_branch
    %14 = sbr.rel (0) target = $region5
  $region4: #{critic_forward.1} parent=0 // pred_region
    _
  $region5: #{critic_forward.1} parent=0 // pred_fallthru
    _
  // Predicated region
  $region6: #{critic_forward.1} parent=0 // pred_check
    _
  $region7: #{critic_forward.1} parent=0 // pred_check_branch
    %16 = sbr.rel (0) target = $region9
  $region8: #{critic_forward.1} parent=0 // pred_region
    _
  $region9: #{critic_forward.1} parent=0 // pred_fallthru
    _
  // Predicated region
  $region10: #{critic_forward.1} parent=0 // pred_check
    _
  $region11: #{critic_forward.1} parent=0 // pred_check_branch
    %18 = sbr.rel (0) target = $region13
  $region12: #{critic_forward.1} parent=0 // pred_region
    _
  $region13: #{critic_forward.1} parent=0 // pred_fallthru
    _
  // Predicated region
  $region14: #{critic_forward.1} parent=0 // pred_check
    _
  $region15: #{critic_forward.1} parent=0 // pred_check_branch
    %20 = sbr.rel (0) target = $region17
  $region16: #{critic_forward.1} parent=0 // pred_region
    _
  $region17: #{critic_forward.1} parent=0 // pred_fallthru
    _
  // Predicated region
  $region18: #{critic_forward.1} parent=0 // pred_check
    _
  $region19: #{critic_forward.1} parent=0 // pred_check_branch
    %22 = sbr.rel (0) target = $region21
  $region20: #{critic_forward.1} parent=0 // pred_region
    _
  $region21: #{critic_forward.1} parent=0 // pred_fallthru
    _
  // Predicated region
  $region22: #{critic_forward.1} parent=0 // pred_check
    _
  $region23: #{critic_forward.1} parent=0 // pred_check_branch
    %24 = sbr.rel (0) target = $region25
  $region24: #{critic_forward.1} parent=0 // pred_region
    _
  $region25: #{critic_forward.1} parent=0 // pred_fallthru
    _
  // Predicated region
  $region26: #{critic_forward.1} parent=0 // pred_check
    _
  $region27: #{critic_forward.1} parent=0 // pred_check_branch
    %26 = sbr.rel (0) target = $region29
  $region28: #{critic_forward.1} parent=0 // pred_region
    _
  $region29: #{critic_forward.1} parent=0 // pred_fallthru
    _
  %v28 = vld [vmem:[%s0] sm:$0xf]
  %v29 = vld [vmem:[%s0 + $0x4] sm:$0xf]
  %v30 = vld [vmem:[%s0 + $0x8] sm:$0xf]
  %v31 = vld [vmem:[%s0 + $0xc] sm:$0xf]
  %v32 = vld [vmem:[%s0 + $0x10] sm:$0xf]
  %v33 = vld [vmem:[%s0 + $0x14] sm:$0xf]
  %v34 = vld [vmem:[%s0 + $0x18] sm:$0xf]
  %v35 = vld [vmem:[%s0 + $0x1c] sm:$0xf]
  %v36 = vld [vmem:[%s0 + $0x20] sm:$0xf]
  %v37 = vld [vmem:[%s0 + $0x24] sm:$0xf]
  %v38 = vld [vmem:[%s0 + $0x28] sm:$0xf]
  %v39 = vld [vmem:[%s0 + $0x2c] sm:$0xf]
  %v40 = vld [vmem:[%s0 + $0x30] sm:$0xf]
  %v41 = vld [vmem:[%s0 + $0x34] sm:$0xf]
  %v42 = vld [vmem:[%s0 + $0x38] sm:$0xf]
  %v43 = vld [vmem:[%s0 + $0x3c] sm:$0xf]
  %v44 = vld [vmem:[%s0 + $0x40] sm:$0xf]
  %v45 = vld [vmem:[%s0 + $0x44] sm:$0xf]
  %v46 = vld [vmem:[%s0 + $0x48] sm:$0xf]
  %v47 = vld [vmem:[%s0 + $0x4c] sm:$0xf]
  %v48 = vld [vmem:[%s0 + $0x50] sm:$0xf]
  %v49 = vld [vmem:[%s0 + $0x54] sm:$0xf]
  %v50 = vld [vmem:[%s0 + $0x58] sm:$0xf]
  %v51 = vld [vmem:[%s0 + $0x5c] sm:$0xf]
  %v52 = vld [vmem:[%s0 + $0x60] sm:$0xf]
  %v53 = vld [vmem:[%s0 + $0x64] sm:$0xf]
  %v54 = vld [vmem:[%s0 + $0x68] sm:$0xf]
  %v55 = vld [vmem:[%s0 + $0x6c] sm:$0xf]
  %v56 = vld [vmem:[%s0 + $0x70] sm:$0xf]
  %v57 = vld [vmem:[%s0 + $0x74] sm:$0xf]
  %v58 = vld [vmem:[%s0 + $0x78] sm:$0xf]
  %v59 = vld [vmem:[%s0 + $0x7c] sm:$0xf]
  %v60 = vld [vmem:[%s1] sm:$0xff]
  %v61 = vld [vmem:[%s1 + $0x8] sm:$0xff]
  %v62 = vld [vmem:[%s1 + $0x10] sm:$0xff]
  %v63 = vld [vmem:[%s1 + $0x18] sm:$0xff]
  %v64 = vld [vmem:[%s2] sm:$0x3]
  %v66 = vlaneseq
  %v67 = vshrl.u32 %v66, 7
  %v68 = vsub.s32 0, %v67
  %v69 = vrot.slane %v64, %v68
  %v70 = vlaneseq
  %v71 = vshrl.u32 %v70, 7
  %v72 = vsub.s32 1, %v71
  %v73 = vrot.slane %v64, %v72
  %v108 = vunpack.c.l.b16 %v28
  %v109 = vunpack.c.l.b16 %v29
  %v110 = vunpack.c.l.b16 %v30
  %v111 = vunpack.c.l.b16 %v31
  %v112 = vunpack.c.l.b16 %v32
  %v113 = vunpack.c.l.b16 %v33
  %v114 = vunpack.c.l.b16 %v34
  %v115 = vunpack.c.l.b16 %v35
  %v116 = vunpack.c.l.b16 %v36
  %v117 = vunpack.c.l.b16 %v37
  %v118 = vunpack.c.l.b16 %v38
  %v119 = vunpack.c.l.b16 %v39
  %v120 = vunpack.c.l.b16 %v40
  %v121 = vunpack.c.l.b16 %v41
  %v122 = vunpack.c.l.b16 %v42
  %v123 = vunpack.c.l.b16 %v43
  %v124 = vunpack.c.l.b16 %v44
  %v125 = vunpack.c.l.b16 %v45
  %v126 = vunpack.c.l.b16 %v46
  %v127 = vunpack.c.l.b16 %v47
  %v128 = vunpack.c.l.b16 %v48
  %v129 = vunpack.c.l.b16 %v49
  %v130 = vunpack.c.l.b16 %v50
  %v131 = vunpack.c.l.b16 %v51
  %v132 = vunpack.c.l.b16 %v52
  %v133 = vunpack.c.l.b16 %v53
  %v134 = vunpack.c.l.b16 %v54
  %v135 = vunpack.c.l.b16 %v55
  %v136 = vunpack.c.l.b16 %v56
  %v137 = vunpack.c.l.b16 %v57
  %v138 = vunpack.c.l.b16 %v58
  %v139 = vunpack.c.l.b16 %v59
  %v140 = vpack.c.b16 %v109, %v108
  %v141 = vpack.c.b16 %v111, %v110
  %v142 = vpack.c.b16 %v113, %v112
  %v143 = vpack.c.b16 %v115, %v114
  %v144 = vpack.c.b16 %v117, %v116
  %v145 = vpack.c.b16 %v119, %v118
  %v146 = vpack.c.b16 %v121, %v120
  %v147 = vpack.c.b16 %v123, %v122
  %v148 = vpack.c.b16 %v125, %v124
  %v149 = vpack.c.b16 %v127, %v126
  %v150 = vpack.c.b16 %v129, %v128
  %v151 = vpack.c.b16 %v131, %v130
  %v152 = vpack.c.b16 %v133, %v132
  %v153 = vpack.c.b16 %v135, %v134
  %v154 = vpack.c.b16 %v137, %v136
  %v155 = vpack.c.b16 %v139, %v138
  %v160 = vunpack.c.l.b16 %v60
  %v161 = vunpack.c.h.b16 %v60
  %v162 = vunpack.c.l.b16 %v61
  %v163 = vunpack.c.h.b16 %v61
  %v164 = vunpack.c.l.b16 %v62
  %v165 = vunpack.c.h.b16 %v62
  %v166 = vunpack.c.l.b16 %v63
  %v167 = vunpack.c.h.b16 %v63
  %v168 = vpack.c.b16 %v162, %v160
  %v169 = vpack.c.b16 %v163, %v161
  %v170 = vpack.c.b16 %v166, %v164
  %v171 = vpack.c.b16 %v167, %v165
  %vm176 = vcmask 261120
  %v178 = vsel %vm176, %v140, 0
  %v181 = vsel %vm176, %v141, 0
  %v184 = vsel %vm176, %v142, 0
  %v187 = vsel %vm176, %v143, 0
  %v190 = vsel %vm176, %v144, 0
  %v193 = vsel %vm176, %v145, 0
  %v196 = vsel %vm176, %v146, 0
  %v199 = vsel %vm176, %v147, 0
  %v202 = vsel %vm176, %v148, 0
  %v205 = vsel %vm176, %v149, 0
  %v208 = vsel %vm176, %v150, 0
  %v211 = vsel %vm176, %v151, 0
  %v214 = vsel %vm176, %v152, 0
  %v217 = vsel %vm176, %v153, 0
  %v220 = vsel %vm176, %v154, 0
  %v223 = vsel %vm176, %v155, 0
  %225 = vmatprep.subr.bf16.mxu0 %v169
  %226 = vmatpush1.bf16.msra.mxu0 %v168
  %227 = vmatprep.subr.bf16.mxu0 %v171
  %228 = vmatpush1.bf16.msra.mxu0 %v170
  %229 = vmatprep.subr.bf16.mxu0 0
  %230 = vmatpush1.bf16.msra.mxu0 0
  %231 = vmatprep.subr.bf16.mxu0 0
  %232 = vmatpush1.bf16.msra.mxu0 0
  %233 = vmatprep.subr.bf16.mxu0 0
  %234 = vmatpush1.bf16.msra.mxu0 0
  %235 = vmatprep.subr.bf16.mxu0 0
  %236 = vmatpush1.bf16.msra.mxu0 0
  %237 = vmatprep.subr.bf16.mxu0 0
  %238 = vmatpush1.bf16.msra.mxu0 0
  %239 = vmatprep.subr.bf16.mxu0 0
  %240 = vmatpush1.bf16.msra.mxu0 0
  %241 = vmatprep.subr.bf16.mxu0 0
  %242 = vmatpush1.bf16.msra.mxu0 0
  %243 = vmatprep.subr.bf16.mxu0 0
  %244 = vmatpush1.bf16.msra.mxu0 0
  %245 = vmatprep.subr.bf16.mxu0 0
  %246 = vmatpush1.bf16.msra.mxu0 0
  %247 = vmatprep.subr.bf16.mxu0 0
  %248 = vmatpush1.bf16.msra.mxu0 0
  %249 = vmatprep.subr.bf16.mxu0 0
  %250 = vmatpush1.bf16.msra.mxu0 0
  %251 = vmatprep.subr.bf16.mxu0 0
  %252 = vmatpush1.bf16.msra.mxu0 0
  %253 = vmatprep.subr.bf16.mxu0 0
  %254 = vmatpush1.bf16.msra.mxu0 0
  %255 = vmatprep.subr.bf16.mxu0 0
  %256 = vmatpush1.bf16.msra.mxu0 0
  %257 = vmatprep.mubr.bf16.mxu0 0
  %258 = vmatmul.mubr.bf16.gmra.mrb[0].mxu0 %v178
  %v259 = vpop.f32.mrb[0].mxu0
  %v260 = vadd.f32 %v69, %v259
  %v261 = vpop.f32.mrb[0].mxu0
  %v262 = vadd.f32 %v73, %v261
  %v263 = vpop.f32.mrb[0].mxu0
  %v264 = vadd.f32 %v69, %v263
  %v265 = vpop.f32.mrb[0].mxu0
  %v266 = vadd.f32 %v73, %v265
  %267 = vmatprep.mubr.bf16.mxu0 0
  %268 = vmatmul.mubr.bf16.gmra.mrb[0].mxu0 %v181
  %v269 = vpop.f32.mrb[0].mxu0
  %v270 = vadd.f32 %v69, %v269
  %v271 = vpop.f32.mrb[0].mxu0
  %v272 = vadd.f32 %v73, %v271
  %v273 = vpop.f32.mrb[0].mxu0
  %v274 = vadd.f32 %v69, %v273
  %v275 = vpop.f32.mrb[0].mxu0
  %v276 = vadd.f32 %v73, %v275
  %277 = vmatprep.mubr.bf16.mxu0 0
  %278 = vmatmul.mubr.bf16.gmra.mrb[0].mxu0 %v184
  %v279 = vpop.f32.mrb[0].mxu0
  %v280 = vadd.f32 %v69, %v279
  %v281 = vpop.f32.mrb[0].mxu0
  %v282 = vadd.f32 %v73, %v281
  %v283 = vpop.f32.mrb[0].mxu0
  %v284 = vadd.f32 %v69, %v283
  %v285 = vpop.f32.mrb[0].mxu0
  %v286 = vadd.f32 %v73, %v285
  %287 = vmatprep.mubr.bf16.mxu0 0
  %288 = vmatmul.mubr.bf16.gmra.mrb[0].mxu0 %v187
  %v289 = vpop.f32.mrb[0].mxu0
  %v290 = vadd.f32 %v69, %v289
  %v291 = vpop.f32.mrb[0].mxu0
  %v292 = vadd.f32 %v73, %v291
  %v293 = vpop.f32.mrb[0].mxu0
  %v294 = vadd.f32 %v69, %v293
  %v295 = vpop.f32.mrb[0].mxu0
  %v296 = vadd.f32 %v73, %v295
  %297 = vmatprep.mubr.bf16.mxu0 0
  %298 = vmatmul.mubr.bf16.gmra.mrb[0].mxu0 %v190
  %v299 = vpop.f32.mrb[0].mxu0
  %v300 = vadd.f32 %v69, %v299
  %v301 = vpop.f32.mrb[0].mxu0
  %v302 = vadd.f32 %v73, %v301
  %v303 = vpop.f32.mrb[0].mxu0
  %v304 = vadd.f32 %v69, %v303
  %v305 = vpop.f32.mrb[0].mxu0
  %v306 = vadd.f32 %v73, %v305
  %307 = vmatprep.mubr.bf16.mxu0 0
  %308 = vmatmul.mubr.bf16.gmra.mrb[0].mxu0 %v193
  %v309 = vpop.f32.mrb[0].mxu0
  %v310 = vadd.f32 %v69, %v309
  %v311 = vpop.f32.mrb[0].mxu0
  %v312 = vadd.f32 %v73, %v311
  %v313 = vpop.f32.mrb[0].mxu0
  %v314 = vadd.f32 %v69, %v313
  %v315 = vpop.f32.mrb[0].mxu0
  %v316 = vadd.f32 %v73, %v315
  %317 = vmatprep.mubr.bf16.mxu0 0
  %318 = vmatmul.mubr.bf16.gmra.mrb[0].mxu0 %v196
  %v319 = vpop.f32.mrb[0].mxu0
  %v320 = vadd.f32 %v69, %v319
  %v321 = vpop.f32.mrb[0].mxu0
  %v322 = vadd.f32 %v73, %v321
  %v323 = vpop.f32.mrb[0].mxu0
  %v324 = vadd.f32 %v69, %v323
  %v325 = vpop.f32.mrb[0].mxu0
  %v326 = vadd.f32 %v73, %v325
  %327 = vmatprep.mubr.bf16.mxu0 0
  %328 = vmatmul.mubr.bf16.gmra.mrb[0].mxu0 %v199
  %v329 = vpop.f32.mrb[0].mxu0
  %v330 = vadd.f32 %v69, %v329
  %v331 = vpop.f32.mrb[0].mxu0
  %v332 = vadd.f32 %v73, %v331
  %v333 = vpop.f32.mrb[0].mxu0
  %v334 = vadd.f32 %v69, %v333
  %v335 = vpop.f32.mrb[0].mxu0
  %v336 = vadd.f32 %v73, %v335
  %337 = vmatprep.mubr.bf16.mxu0 0
  %338 = vmatmul.mubr.bf16.gmra.mrb[0].mxu0 %v202
  %v339 = vpop.f32.mrb[0].mxu0
  %v340 = vadd.f32 %v69, %v339
  %v341 = vpop.f32.mrb[0].mxu0
  %v342 = vadd.f32 %v73, %v341
  %v343 = vpop.f32.mrb[0].mxu0
  %v344 = vadd.f32 %v69, %v343
  %v345 = vpop.f32.mrb[0].mxu0
  %v346 = vadd.f32 %v73, %v345
  %347 = vmatprep.mubr.bf16.mxu0 0
  %348 = vmatmul.mubr.bf16.gmra.mrb[0].mxu0 %v205
  %v349 = vpop.f32.mrb[0].mxu0
  %v350 = vadd.f32 %v69, %v349
  %v351 = vpop.f32.mrb[0].mxu0
  %v352 = vadd.f32 %v73, %v351
  %v353 = vpop.f32.mrb[0].mxu0
  %v354 = vadd.f32 %v69, %v353
  %v355 = vpop.f32.mrb[0].mxu0
  %v356 = vadd.f32 %v73, %v355
  %357 = vmatprep.mubr.bf16.mxu0 0
  %358 = vmatmul.mubr.bf16.gmra.mrb[0].mxu0 %v208
  %v359 = vpop.f32.mrb[0].mxu0
  %v360 = vadd.f32 %v69, %v359
  %v361 = vpop.f32.mrb[0].mxu0
  %v362 = vadd.f32 %v73, %v361
  %v363 = vpop.f32.mrb[0].mxu0
  %v364 = vadd.f32 %v69, %v363
  %v365 = vpop.f32.mrb[0].mxu0
  %v366 = vadd.f32 %v73, %v365
  %367 = vmatprep.mubr.bf16.mxu0 0
  %368 = vmatmul.mubr.bf16.gmra.mrb[0].mxu0 %v211
  %v369 = vpop.f32.mrb[0].mxu0
  %v370 = vadd.f32 %v69, %v369
  %v371 = vpop.f32.mrb[0].mxu0
  %v372 = vadd.f32 %v73, %v371
  %v373 = vpop.f32.mrb[0].mxu0
  %v374 = vadd.f32 %v69, %v373
  %v375 = vpop.f32.mrb[0].mxu0
  %v376 = vadd.f32 %v73, %v375
  %377 = vmatprep.mubr.bf16.mxu0 0
  %378 = vmatmul.mubr.bf16.gmra.mrb[0].mxu0 %v214
  %v379 = vpop.f32.mrb[0].mxu0
  %v380 = vadd.f32 %v69, %v379
  %v381 = vpop.f32.mrb[0].mxu0
  %v382 = vadd.f32 %v73, %v381
  %v383 = vpop.f32.mrb[0].mxu0
  %v384 = vadd.f32 %v69, %v383
  %v385 = vpop.f32.mrb[0].mxu0
  %v386 = vadd.f32 %v73, %v385
  %387 = vmatprep.mubr.bf16.mxu0 0
  %388 = vmatmul.mubr.bf16.gmra.mrb[0].mxu0 %v217
  %v389 = vpop.f32.mrb[0].mxu0
  %v390 = vadd.f32 %v69, %v389
  %v391 = vpop.f32.mrb[0].mxu0
  %v392 = vadd.f32 %v73, %v391
  %v393 = vpop.f32.mrb[0].mxu0
  %v394 = vadd.f32 %v69, %v393
  %v395 = vpop.f32.mrb[0].mxu0
  %v396 = vadd.f32 %v73, %v395
  %397 = vmatprep.mubr.bf16.mxu0 0
  %398 = vmatmul.mubr.bf16.gmra.mrb[0].mxu0 %v220
  %v399 = vpop.f32.mrb[0].mxu0
  %v400 = vadd.f32 %v69, %v399
  %v401 = vpop.f32.mrb[0].mxu0
  %v402 = vadd.f32 %v73, %v401
  %v403 = vpop.f32.mrb[0].mxu0
  %v404 = vadd.f32 %v69, %v403
  %v405 = vpop.f32.mrb[0].mxu0
  %v406 = vadd.f32 %v73, %v405
  %407 = vmatprep.mubr.bf16.mxu0 0
  %408 = vmatmul.mubr.bf16.gmra.mrb[0].mxu0 %v223
  %v409 = vpop.f32.mrb[0].mxu0
  %v410 = vadd.f32 %v69, %v409
  %v411 = vpop.f32.mrb[0].mxu0
  %v412 = vadd.f32 %v73, %v411
  %v413 = vpop.f32.mrb[0].mxu0
  %v414 = vadd.f32 %v69, %v413
  %v415 = vpop.f32.mrb[0].mxu0
  %v416 = vadd.f32 %v73, %v415
  %417 = vdwg.mxu0
  %v418 = vmax.f32 %v260, 0.0
  %v419 = vmax.f32 %v262, 0.0
  %v420 = vmax.f32 %v264, 0.0
  %v421 = vmax.f32 %v266, 0.0
  %v422 = vmax.f32 %v270, 0.0
  %v423 = vmax.f32 %v272, 0.0
  %v424 = vmax.f32 %v274, 0.0
  %v425 = vmax.f32 %v276, 0.0
  %v426 = vmax.f32 %v280, 0.0
  %v427 = vmax.f32 %v282, 0.0
  %v428 = vmax.f32 %v284, 0.0
  %v429 = vmax.f32 %v286, 0.0
  %v430 = vmax.f32 %v290, 0.0
  %v431 = vmax.f32 %v292, 0.0
  %v432 = vmax.f32 %v294, 0.0
  %v433 = vmax.f32 %v296, 0.0
  %v434 = vmax.f32 %v300, 0.0
  %v435 = vmax.f32 %v302, 0.0
  %v436 = vmax.f32 %v304, 0.0
  %v437 = vmax.f32 %v306, 0.0
  %v438 = vmax.f32 %v310, 0.0
  %v439 = vmax.f32 %v312, 0.0
  %v440 = vmax.f32 %v314, 0.0
  %v441 = vmax.f32 %v316, 0.0
  %v442 = vmax.f32 %v320, 0.0
  %v443 = vmax.f32 %v322, 0.0
  %v444 = vmax.f32 %v324, 0.0
  %v445 = vmax.f32 %v326, 0.0
  %v446 = vmax.f32 %v330, 0.0
  %v447 = vmax.f32 %v332, 0.0
  %v448 = vmax.f32 %v334, 0.0
  %v449 = vmax.f32 %v336, 0.0
  %v450 = vmax.f32 %v340, 0.0
  %v451 = vmax.f32 %v342, 0.0
  %v452 = vmax.f32 %v344, 0.0
  %v453 = vmax.f32 %v346, 0.0
  %v454 = vmax.f32 %v350, 0.0
  %v455 = vmax.f32 %v352, 0.0
  %v456 = vmax.f32 %v354, 0.0
  %v457 = vmax.f32 %v356, 0.0
  %v458 = vmax.f32 %v360, 0.0
  %v459 = vmax.f32 %v362, 0.0
  %v460 = vmax.f32 %v364, 0.0
  %v461 = vmax.f32 %v366, 0.0
  %v462 = vmax.f32 %v370, 0.0
  %v463 = vmax.f32 %v372, 0.0
  %v464 = vmax.f32 %v374, 0.0
  %v465 = vmax.f32 %v376, 0.0
  %v466 = vmax.f32 %v380, 0.0
  %v467 = vmax.f32 %v382, 0.0
  %v468 = vmax.f32 %v384, 0.0
  %v469 = vmax.f32 %v386, 0.0
  %v470 = vmax.f32 %v390, 0.0
  %v471 = vmax.f32 %v392, 0.0
  %v472 = vmax.f32 %v394, 0.0
  %v473 = vmax.f32 %v396, 0.0
  %v474 = vmax.f32 %v400, 0.0
  %v475 = vmax.f32 %v402, 0.0
  %v476 = vmax.f32 %v404, 0.0
  %v477 = vmax.f32 %v406, 0.0
  %v478 = vmax.f32 %v410, 0.0
  %v479 = vmax.f32 %v412, 0.0
  %v480 = vmax.f32 %v414, 0.0
  %v481 = vmax.f32 %v416, 0.0
  %v482 = vpack.c.bf16 %v420, %v418
  %v483 = vpack.c.bf16 %v421, %v419
  %v484 = vpack.c.bf16 %v424, %v422
  %v485 = vpack.c.bf16 %v425, %v423
  %v486 = vpack.c.bf16 %v428, %v426
  %v487 = vpack.c.bf16 %v429, %v427
  %v488 = vpack.c.bf16 %v432, %v430
  %v489 = vpack.c.bf16 %v433, %v431
  %v490 = vpack.c.bf16 %v436, %v434
  %v491 = vpack.c.bf16 %v437, %v435
  %v492 = vpack.c.bf16 %v440, %v438
  %v493 = vpack.c.bf16 %v441, %v439
  %v494 = vpack.c.bf16 %v444, %v442
  %v495 = vpack.c.bf16 %v445, %v443
  %v496 = vpack.c.bf16 %v448, %v446
  %v497 = vpack.c.bf16 %v449, %v447
  %v498 = vpack.c.bf16 %v452, %v450
  %v499 = vpack.c.bf16 %v453, %v451
  %v500 = vpack.c.bf16 %v456, %v454
  %v501 = vpack.c.bf16 %v457, %v455
  %v502 = vpack.c.bf16 %v460, %v458
  %v503 = vpack.c.bf16 %v461, %v459
  %v504 = vpack.c.bf16 %v464, %v462
  %v505 = vpack.c.bf16 %v465, %v463
  %v506 = vpack.c.bf16 %v468, %v466
  %v507 = vpack.c.bf16 %v469, %v467
  %v508 = vpack.c.bf16 %v472, %v470
  %v509 = vpack.c.bf16 %v473, %v471
  %v510 = vpack.c.bf16 %v476, %v474
  %v511 = vpack.c.bf16 %v477, %v475
  %v512 = vpack.c.bf16 %v480, %v478
  %v513 = vpack.c.bf16 %v481, %v479
  %v514 = vld [vmem:[%s3] sm:$0xff]
  %v515 = vld [vmem:[%s3 + $0x8] sm:$0xff]
  %v516 = vld [vmem:[%s3 + $0x10] sm:$0xff]
  %v517 = vld [vmem:[%s3 + $0x18] sm:$0xff]
  %v518 = vld [vmem:[%s3 + $0x20] sm:$0xff]
  %v519 = vld [vmem:[%s3 + $0x28] sm:$0xff]
  %v520 = vld [vmem:[%s3 + $0x30] sm:$0xff]
  %v521 = vld [vmem:[%s3 + $0x38] sm:$0xff]
  %v522 = vld [vmem:[%s3 + $0x40] sm:$0xff]
  %v523 = vld [vmem:[%s3 + $0x48] sm:$0xff]
  %v524 = vld [vmem:[%s3 + $0x50] sm:$0xff]
  %v525 = vld [vmem:[%s3 + $0x58] sm:$0xff]
  %v526 = vld [vmem:[%s3 + $0x60] sm:$0xff]
  %v527 = vld [vmem:[%s3 + $0x68] sm:$0xff]
  %v528 = vld [vmem:[%s3 + $0x70] sm:$0xff]
  %v529 = vld [vmem:[%s3 + $0x78] sm:$0xff]
  %v530 = vld [vmem:[%s3 + $0x80] sm:$0xff]
  %v531 = vld [vmem:[%s3 + $0x88] sm:$0xff]
  %v532 = vld [vmem:[%s3 + $0x90] sm:$0xff]
  %v533 = vld [vmem:[%s3 + $0x98] sm:$0xff]
  %v534 = vld [vmem:[%s3 + $0xa0] sm:$0xff]
  %v535 = vld [vmem:[%s3 + $0xa8] sm:$0xff]
  %v536 = vld [vmem:[%s3 + $0xb0] sm:$0xff]
  %v537 = vld [vmem:[%s3 + $0xb8] sm:$0xff]
  %v538 = vld [vmem:[%s3 + $0xc0] sm:$0xff]
  %v539 = vld [vmem:[%s3 + $0xc8] sm:$0xff]
  %v540 = vld [vmem:[%s3 + $0xd0] sm:$0xff]
  %v541 = vld [vmem:[%s3 + $0xd8] sm:$0xff]
  %v542 = vld [vmem:[%s3 + $0xe0] sm:$0xff]
  %v543 = vld [vmem:[%s3 + $0xe8] sm:$0xff]
  %v544 = vld [vmem:[%s3 + $0xf0] sm:$0xff]
  %v545 = vld [vmem:[%s3 + $0xf8] sm:$0xff]
  %v546 = vld [vmem:[%s4] sm:$0x3]
  %v548 = vlaneseq
  %v549 = vshrl.u32 %v548, 7
  %v550 = vsub.s32 0, %v549
  %v551 = vrot.slane %v546, %v550
  %v552 = vlaneseq
  %v553 = vshrl.u32 %v552, 7
  %v554 = vsub.s32 1, %v553
  %v555 = vrot.slane %v546, %v554
  %v590 = vunpack.c.l.b16 %v514
  %v591 = vunpack.c.h.b16 %v514
  %v592 = vunpack.c.l.b16 %v515
  %v593 = vunpack.c.h.b16 %v515
  %v594 = vunpack.c.l.b16 %v516
  %v595 = vunpack.c.h.b16 %v516
  %v596 = vunpack.c.l.b16 %v517
  %v597 = vunpack.c.h.b16 %v517
  %v598 = vunpack.c.l.b16 %v518
  %v599 = vunpack.c.h.b16 %v518
  %v600 = vunpack.c.l.b16 %v519
  %v601 = vunpack.c.h.b16 %v519
  %v602 = vunpack.c.l.b16 %v520
  %v603 = vunpack.c.h.b16 %v520
  %v604 = vunpack.c.l.b16 %v521
  %v605 = vunpack.c.h.b16 %v521
  %v606 = vunpack.c.l.b16 %v522
  %v607 = vunpack.c.h.b16 %v522
  %v608 = vunpack.c.l.b16 %v523
  %v609 = vunpack.c.h.b16 %v523
  %v610 = vunpack.c.l.b16 %v524
  %v611 = vunpack.c.h.b16 %v524
  %v612 = vunpack.c.l.b16 %v525
  %v613 = vunpack.c.h.b16 %v525
  %v614 = vunpack.c.l.b16 %v526
  %v615 = vunpack.c.h.b16 %v526
  %v616 = vunpack.c.l.b16 %v527
  %v617 = vunpack.c.h.b16 %v527
  %v618 = vunpack.c.l.b16 %v528
  %v619 = vunpack.c.h.b16 %v528
  %v620 = vunpack.c.l.b16 %v529
  %v621 = vunpack.c.h.b16 %v529
  %v622 = vunpack.c.l.b16 %v530
  %v623 = vunpack.c.h.b16 %v530
  %v624 = vunpack.c.l.b16 %v531
  %v625 = vunpack.c.h.b16 %v531
  %v626 = vunpack.c.l.b16 %v532
  %v627 = vunpack.c.h.b16 %v532
  %v628 = vunpack.c.l.b16 %v533
  %v629 = vunpack.c.h.b16 %v533
  %v630 = vunpack.c.l.b16 %v534
  %v631 = vunpack.c.h.b16 %v534
  %v632 = vunpack.c.l.b16 %v535
  %v633 = vunpack.c.h.b16 %v535
  %v634 = vunpack.c.l.b16 %v536
  %v635 = vunpack.c.h.b16 %v536
  %v636 = vunpack.c.l.b16 %v537
  %v637 = vunpack.c.h.b16 %v537
  %v638 = vunpack.c.l.b16 %v538
  %v639 = vunpack.c.h.b16 %v538
  %v640 = vunpack.c.l.b16 %v539
  %v641 = vunpack.c.h.b16 %v539
  %v642 = vunpack.c.l.b16 %v540
  %v643 = vunpack.c.h.b16 %v540
  %v644 = vunpack.c.l.b16 %v541
  %v645 = vunpack.c.h.b16 %v541
  %v646 = vunpack.c.l.b16 %v542
  %v647 = vunpack.c.h.b16 %v542
  %v648 = vunpack.c.l.b16 %v543
  %v649 = vunpack.c.h.b16 %v543
  %v650 = vunpack.c.l.b16 %v544
  %v651 = vunpack.c.h.b16 %v544
  %v652 = vunpack.c.l.b16 %v545
  %v653 = vunpack.c.h.b16 %v545
  %v654 = vpack.c.b16 %v592, %v590
  %v655 = vpack.c.b16 %v593, %v591
  %v656 = vpack.c.b16 %v596, %v594
  %v657 = vpack.c.b16 %v597, %v595
  %v658 = vpack.c.b16 %v600, %v598
  %v659 = vpack.c.b16 %v601, %v599
  %v660 = vpack.c.b16 %v604, %v602
  %v661 = vpack.c.b16 %v605, %v603
  %v662 = vpack.c.b16 %v608, %v606
  %v663 = vpack.c.b16 %v609, %v607
  %v664 = vpack.c.b16 %v612, %v610
  %v665 = vpack.c.b16 %v613, %v611
  %v666 = vpack.c.b16 %v616, %v614
  %v667 = vpack.c.b16 %v617, %v615
  %v668 = vpack.c.b16 %v620, %v618
  %v669 = vpack.c.b16 %v621, %v619
  %v670 = vpack.c.b16 %v624, %v622
  %v671 = vpack.c.b16 %v625, %v623
  %v672 = vpack.c.b16 %v628, %v626
  %v673 = vpack.c.b16 %v629, %v627
  %v674 = vpack.c.b16 %v632, %v630
  %v675 = vpack.c.b16 %v633, %v631
  %v676 = vpack.c.b16 %v636, %v634
  %v677 = vpack.c.b16 %v637, %v635
  %v678 = vpack.c.b16 %v640, %v638
  %v679 = vpack.c.b16 %v641, %v639
  %v680 = vpack.c.b16 %v644, %v642
  %v681 = vpack.c.b16 %v645, %v643
  %v682 = vpack.c.b16 %v648, %v646
  %v683 = vpack.c.b16 %v649, %v647
  %v684 = vpack.c.b16 %v652, %v650
  %v685 = vpack.c.b16 %v653, %v651
  %718 = vmatprep.subr.bf16.mxu0 %v655
  %719 = vmatpush1.bf16.msra.mxu0 %v654
  %720 = vmatprep.subr.bf16.mxu0 %v657
  %721 = vmatpush1.bf16.msra.mxu0 %v656
  %722 = vmatprep.subr.bf16.mxu0 %v659
  %723 = vmatpush1.bf16.msra.mxu0 %v658
  %724 = vmatprep.subr.bf16.mxu0 %v661
  %725 = vmatpush1.bf16.msra.mxu0 %v660
  %726 = vmatprep.subr.bf16.mxu0 %v663
  %727 = vmatpush1.bf16.msra.mxu0 %v662
  %728 = vmatprep.subr.bf16.mxu0 %v665
  %729 = vmatpush1.bf16.msra.mxu0 %v664
  %730 = vmatprep.subr.bf16.mxu0 %v667
  %731 = vmatpush1.bf16.msra.mxu0 %v666
  %732 = vmatprep.subr.bf16.mxu0 %v669
  %733 = vmatpush1.bf16.msra.mxu0 %v668
  %734 = vmatprep.subr.bf16.mxu0 %v671
  %735 = vmatpush1.bf16.msra.mxu0 %v670
  %736 = vmatprep.subr.bf16.mxu0 %v673
  %737 = vmatpush1.bf16.msra.mxu0 %v672
  %738 = vmatprep.subr.bf16.mxu0 %v675
  %739 = vmatpush1.bf16.msra.mxu0 %v674
  %740 = vmatprep.subr.bf16.mxu0 %v677
  %741 = vmatpush1.bf16.msra.mxu0 %v676
  %742 = vmatprep.subr.bf16.mxu0 %v679
  %743 = vmatpush1.bf16.msra.mxu0 %v678
  %744 = vmatprep.subr.bf16.mxu0 %v681
  %745 = vmatpush1.bf16.msra.mxu0 %v680
  %746 = vmatprep.subr.bf16.mxu0 %v683
  %747 = vmatpush1.bf16.msra.mxu0 %v682
  %748 = vmatprep.subr.bf16.mxu0 %v685
  %749 = vmatpush1.bf16.msra.mxu0 %v684
  %750 = vmatprep.mubr.bf16.mxu0 %v483
  %751 = vmatmul.mubr.bf16.gmra.mrb[0].mxu0 %v482
  %v752 = vpop.f32.mrb[0].mxu0
  %v753 = vadd.f32 %v551, %v752
  %v754 = vpop.f32.mrb[0].mxu0
  %v755 = vadd.f32 %v555, %v754
  %v756 = vpop.f32.mrb[0].mxu0
  %v757 = vadd.f32 %v551, %v756
  %v758 = vpop.f32.mrb[0].mxu0
  %v759 = vadd.f32 %v555, %v758
  %760 = vmatprep.mubr.bf16.mxu0 %v485
  %761 = vmatmul.mubr.bf16.gmra.mrb[0].mxu0 %v484
  %v762 = vpop.f32.mrb[0].mxu0
  %v763 = vadd.f32 %v551, %v762
  %v764 = vpop.f32.mrb[0].mxu0
  %v765 = vadd.f32 %v555, %v764
  %v766 = vpop.f32.mrb[0].mxu0
  %v767 = vadd.f32 %v551, %v766
  %v768 = vpop.f32.mrb[0].mxu0
  %v769 = vadd.f32 %v555, %v768
  %770 = vmatprep.mubr.bf16.mxu0 %v487
  %771 = vmatmul.mubr.bf16.gmra.mrb[0].mxu0 %v486
  %v772 = vpop.f32.mrb[0].mxu0
  %v773 = vadd.f32 %v551, %v772
  %v774 = vpop.f32.mrb[0].mxu0
  %v775 = vadd.f32 %v555, %v774
  %v776 = vpop.f32.mrb[0].mxu0
  %v777 = vadd.f32 %v551, %v776
  %v778 = vpop.f32.mrb[0].mxu0
  %v779 = vadd.f32 %v555, %v778
  %780 = vmatprep.mubr.bf16.mxu0 %v489
  %781 = vmatmul.mubr.bf16.gmra.mrb[0].mxu0 %v488
  %v782 = vpop.f32.mrb[0].mxu0
  %v783 = vadd.f32 %v551, %v782
  %v784 = vpop.f32.mrb[0].mxu0
  %v785 = vadd.f32 %v555, %v784
  %v786 = vpop.f32.mrb[0].mxu0
  %v787 = vadd.f32 %v551, %v786
  %v788 = vpop.f32.mrb[0].mxu0
  %v789 = vadd.f32 %v555, %v788
  %790 = vmatprep.mubr.bf16.mxu0 %v491
  %791 = vmatmul.mubr.bf16.gmra.mrb[0].mxu0 %v490
  %v792 = vpop.f32.mrb[0].mxu0
  %v793 = vadd.f32 %v551, %v792
  %v794 = vpop.f32.mrb[0].mxu0
  %v795 = vadd.f32 %v555, %v794
  %v796 = vpop.f32.mrb[0].mxu0
  %v797 = vadd.f32 %v551, %v796
  %v798 = vpop.f32.mrb[0].mxu0
  %v799 = vadd.f32 %v555, %v798
  %800 = vmatprep.mubr.bf16.mxu0 %v493
  %801 = vmatmul.mubr.bf16.gmra.mrb[0].mxu0 %v492
  %v802 = vpop.f32.mrb[0].mxu0
  %v803 = vadd.f32 %v551, %v802
  %v804 = vpop.f32.mrb[0].mxu0
  %v805 = vadd.f32 %v555, %v804
  %v806 = vpop.f32.mrb[0].mxu0
  %v807 = vadd.f32 %v551, %v806
  %v808 = vpop.f32.mrb[0].mxu0
  %v809 = vadd.f32 %v555, %v808
  %810 = vmatprep.mubr.bf16.mxu0 %v495
  %811 = vmatmul.mubr.bf16.gmra.mrb[0].mxu0 %v494
  %v812 = vpop.f32.mrb[0].mxu0
  %v813 = vadd.f32 %v551, %v812
  %v814 = vpop.f32.mrb[0].mxu0
  %v815 = vadd.f32 %v555, %v814
  %v816 = vpop.f32.mrb[0].mxu0
  %v817 = vadd.f32 %v551, %v816
  %v818 = vpop.f32.mrb[0].mxu0
  %v819 = vadd.f32 %v555, %v818
  %820 = vmatprep.mubr.bf16.mxu0 %v497
  %821 = vmatmul.mubr.bf16.gmra.mrb[0].mxu0 %v496
  %v822 = vpop.f32.mrb[0].mxu0
  %v823 = vadd.f32 %v551, %v822
  %v824 = vpop.f32.mrb[0].mxu0
  %v825 = vadd.f32 %v555, %v824
  %v826 = vpop.f32.mrb[0].mxu0
  %v827 = vadd.f32 %v551, %v826
  %v828 = vpop.f32.mrb[0].mxu0
  %v829 = vadd.f32 %v555, %v828
  %830 = vmatprep.mubr.bf16.mxu0 %v499
  %831 = vmatmul.mubr.bf16.gmra.mrb[0].mxu0 %v498
  %v832 = vpop.f32.mrb[0].mxu0
  %v833 = vadd.f32 %v551, %v832
  %v834 = vpop.f32.mrb[0].mxu0
  %v835 = vadd.f32 %v555, %v834
  %v836 = vpop.f32.mrb[0].mxu0
  %v837 = vadd.f32 %v551, %v836
  %v838 = vpop.f32.mrb[0].mxu0
  %v839 = vadd.f32 %v555, %v838
  %840 = vmatprep.mubr.bf16.mxu0 %v501
  %841 = vmatmul.mubr.bf16.gmra.mrb[0].mxu0 %v500
  %v842 = vpop.f32.mrb[0].mxu0
  %v843 = vadd.f32 %v551, %v842
  %v844 = vpop.f32.mrb[0].mxu0
  %v845 = vadd.f32 %v555, %v844
  %v846 = vpop.f32.mrb[0].mxu0
  %v847 = vadd.f32 %v551, %v846
  %v848 = vpop.f32.mrb[0].mxu0
  %v849 = vadd.f32 %v555, %v848
  %850 = vmatprep.mubr.bf16.mxu0 %v503
  %851 = vmatmul.mubr.bf16.gmra.mrb[0].mxu0 %v502
  %v852 = vpop.f32.mrb[0].mxu0
  %v853 = vadd.f32 %v551, %v852
  %v854 = vpop.f32.mrb[0].mxu0
  %v855 = vadd.f32 %v555, %v854
  %v856 = vpop.f32.mrb[0].mxu0
  %v857 = vadd.f32 %v551, %v856
  %v858 = vpop.f32.mrb[0].mxu0
  %v859 = vadd.f32 %v555, %v858
  %860 = vmatprep.mubr.bf16.mxu0 %v505
  %861 = vmatmul.mubr.bf16.gmra.mrb[0].mxu0 %v504
  %v862 = vpop.f32.mrb[0].mxu0
  %v863 = vadd.f32 %v551, %v862
  %v864 = vpop.f32.mrb[0].mxu0
  %v865 = vadd.f32 %v555, %v864
  %v866 = vpop.f32.mrb[0].mxu0
  %v867 = vadd.f32 %v551, %v866
  %v868 = vpop.f32.mrb[0].mxu0
  %v869 = vadd.f32 %v555, %v868
  %870 = vmatprep.mubr.bf16.mxu0 %v507
  %871 = vmatmul.mubr.bf16.gmra.mrb[0].mxu0 %v506
  %v872 = vpop.f32.mrb[0].mxu0
  %v873 = vadd.f32 %v551, %v872
  %v874 = vpop.f32.mrb[0].mxu0
  %v875 = vadd.f32 %v555, %v874
  %v876 = vpop.f32.mrb[0].mxu0
  %v877 = vadd.f32 %v551, %v876
  %v878 = vpop.f32.mrb[0].mxu0
  %v879 = vadd.f32 %v555, %v878
  %880 = vmatprep.mubr.bf16.mxu0 %v509
  %881 = vmatmul.mubr.bf16.gmra.mrb[0].mxu0 %v508
  %v882 = vpop.f32.mrb[0].mxu0
  %v883 = vadd.f32 %v551, %v882
  %v884 = vpop.f32.mrb[0].mxu0
  %v885 = vadd.f32 %v555, %v884
  %v886 = vpop.f32.mrb[0].mxu0
  %v887 = vadd.f32 %v551, %v886
  %v888 = vpop.f32.mrb[0].mxu0
  %v889 = vadd.f32 %v555, %v888
  %890 = vmatprep.mubr.bf16.mxu0 %v511
  %891 = vmatmul.mubr.bf16.gmra.mrb[0].mxu0 %v510
  %v892 = vpop.f32.mrb[0].mxu0
  %v893 = vadd.f32 %v551, %v892
  %v894 = vpop.f32.mrb[0].mxu0
  %v895 = vadd.f32 %v555, %v894
  %v896 = vpop.f32.mrb[0].mxu0
  %v897 = vadd.f32 %v551, %v896
  %v898 = vpop.f32.mrb[0].mxu0
  %v899 = vadd.f32 %v555, %v898
  %900 = vmatprep.mubr.bf16.mxu0 %v513
  %901 = vmatmul.mubr.bf16.gmra.mrb[0].mxu0 %v512
  %v902 = vpop.f32.mrb[0].mxu0
  %v903 = vadd.f32 %v551, %v902
  %v904 = vpop.f32.mrb[0].mxu0
  %v905 = vadd.f32 %v555, %v904
  %v906 = vpop.f32.mrb[0].mxu0
  %v907 = vadd.f32 %v551, %v906
  %v908 = vpop.f32.mrb[0].mxu0
  %v909 = vadd.f32 %v555, %v908
  %910 = vdwg.mxu0
  %v911 = vmax.f32 %v753, 0.0
  %v912 = vmax.f32 %v755, 0.0
  %v913 = vmax.f32 %v757, 0.0
  %v914 = vmax.f32 %v759, 0.0
  %v915 = vmax.f32 %v763, 0.0
  %v916 = vmax.f32 %v765, 0.0
  %v917 = vmax.f32 %v767, 0.0
  %v918 = vmax.f32 %v769, 0.0
  %v919 = vmax.f32 %v773, 0.0
  %v920 = vmax.f32 %v775, 0.0
  %v921 = vmax.f32 %v777, 0.0
  %v922 = vmax.f32 %v779, 0.0
  %v923 = vmax.f32 %v783, 0.0
  %v924 = vmax.f32 %v785, 0.0
  %v925 = vmax.f32 %v787, 0.0
  %v926 = vmax.f32 %v789, 0.0
  %v927 = vmax.f32 %v793, 0.0
  %v928 = vmax.f32 %v795, 0.0
  %v929 = vmax.f32 %v797, 0.0
  %v930 = vmax.f32 %v799, 0.0
  %v931 = vmax.f32 %v803, 0.0
  %v932 = vmax.f32 %v805, 0.0
  %v933 = vmax.f32 %v807, 0.0
  %v934 = vmax.f32 %v809, 0.0
  %v935 = vmax.f32 %v813, 0.0
  %v936 = vmax.f32 %v815, 0.0
  %v937 = vmax.f32 %v817, 0.0
  %v938 = vmax.f32 %v819, 0.0
  %v939 = vmax.f32 %v823, 0.0
  %v940 = vmax.f32 %v825, 0.0
  %v941 = vmax.f32 %v827, 0.0
  %v942 = vmax.f32 %v829, 0.0
  %v943 = vmax.f32 %v833, 0.0
  %v944 = vmax.f32 %v835, 0.0
  %v945 = vmax.f32 %v837, 0.0
  %v946 = vmax.f32 %v839, 0.0
  %v947 = vmax.f32 %v843, 0.0
  %v948 = vmax.f32 %v845, 0.0
  %v949 = vmax.f32 %v847, 0.0
  %v950 = vmax.f32 %v849, 0.0
  %v951 = vmax.f32 %v853, 0.0
  %v952 = vmax.f32 %v855, 0.0
  %v953 = vmax.f32 %v857, 0.0
  %v954 = vmax.f32 %v859, 0.0
  %v955 = vmax.f32 %v863, 0.0
  %v956 = vmax.f32 %v865, 0.0
  %v957 = vmax.f32 %v867, 0.0
  %v958 = vmax.f32 %v869, 0.0
  %v959 = vmax.f32 %v873, 0.0
  %v960 = vmax.f32 %v875, 0.0
  %v961 = vmax.f32 %v877, 0.0
  %v962 = vmax.f32 %v879, 0.0
  %v963 = vmax.f32 %v883, 0.0
  %v964 = vmax.f32 %v885, 0.0
  %v965 = vmax.f32 %v887, 0.0
  %v966 = vmax.f32 %v889, 0.0
  %v967 = vmax.f32 %v893, 0.0
  %v968 = vmax.f32 %v895, 0.0
  %v969 = vmax.f32 %v897, 0.0
  %v970 = vmax.f32 %v899, 0.0
  %v971 = vmax.f32 %v903, 0.0
  %v972 = vmax.f32 %v905, 0.0
  %v973 = vmax.f32 %v907, 0.0
  %v974 = vmax.f32 %v909, 0.0
  %v975 = vld [vmem:[%s5] sm:$0x3]
  %s976 = sld [smem:[#allocation2]]
  %v977 = vstv %s976
  %v979 = vlaneseq
  %v980 = vshrl.u32 %v979, 7
  %v981 = vsub.s32 0, %v980
  %v982 = vrot.slane %v975, %v981
  %v983 = vlaneseq
  %v984 = vshrl.u32 %v983, 7
  %v985 = vsub.s32 1, %v984
  %v986 = vrot.slane %v975, %v985
  %989 = vmatprep.subr.mxu0 %v912
  %990 = vmatpush1.xpose.msra.mxu0 %v911
  %991 = vmatprep.subr.mxu0 %v914
  %992 = vmatpush1.xpose.msra.mxu0 %v913
  %993 = vmatprep.subr.mxu0 %v916
  %994 = vmatpush1.xpose.msra.mxu0 %v915
  %995 = vmatprep.subr.mxu0 %v918
  %996 = vmatpush1.xpose.msra.mxu0 %v917
  %997 = vmatprep.subr.mxu0 %v920
  %998 = vmatpush1.xpose.msra.mxu0 %v919
  %999 = vmatprep.subr.mxu0 %v922
  %1000 = vmatpush1.xpose.msra.mxu0 %v921
  %1001 = vmatprep.subr.mxu0 %v924
  %1002 = vmatpush1.xpose.msra.mxu0 %v923
  %1003 = vmatprep.subr.mxu0 %v926
  %1004 = vmatpush1.xpose.msra.mxu0 %v925
  %1005 = vmatprep.subr.mxu0 %v928
  %1006 = vmatpush1.xpose.msra.mxu0 %v927
  %1007 = vmatprep.subr.mxu0 %v930
  %1008 = vmatpush1.xpose.msra.mxu0 %v929
  %1009 = vmatprep.subr.mxu0 %v932
  %1010 = vmatpush1.xpose.msra.mxu0 %v931
  %1011 = vmatprep.subr.mxu0 %v934
  %1012 = vmatpush1.xpose.msra.mxu0 %v933
  %1013 = vmatprep.subr.mxu0 %v936
  %1014 = vmatpush1.xpose.msra.mxu0 %v935
  %1015 = vmatprep.subr.mxu0 %v938
  %1016 = vmatpush1.xpose.msra.mxu0 %v937
  %1017 = vmatprep.subr.mxu0 %v940
  %1018 = vmatpush1.xpose.msra.mxu0 %v939
  %1019 = vmatprep.subr.mxu0 %v942
  %1020 = vmatpush1.xpose.msra.mxu0 %v941
  %1021 = vmatprep.subr.mxu0 %v944
  %1022 = vmatpush1.xpose.msra.mxu0 %v943
  %1023 = vmatprep.subr.mxu0 %v946
  %1024 = vmatpush1.xpose.msra.mxu0 %v945
  %1025 = vmatprep.subr.mxu0 %v948
  %1026 = vmatpush1.xpose.msra.mxu0 %v947
  %1027 = vmatprep.subr.mxu0 %v950
  %1028 = vmatpush1.xpose.msra.mxu0 %v949
  %1029 = vmatprep.subr.mxu0 %v952
  %1030 = vmatpush1.xpose.msra.mxu0 %v951
  %1031 = vmatprep.subr.mxu0 %v954
  %1032 = vmatpush1.xpose.msra.mxu0 %v953
  %1033 = vmatprep.subr.mxu0 %v956
  %1034 = vmatpush1.xpose.msra.mxu0 %v955
  %1035 = vmatprep.subr.mxu0 %v958
  %1036 = vmatpush1.xpose.msra.mxu0 %v957
  %1037 = vmatprep.subr.mxu0 %v960
  %1038 = vmatpush1.xpose.msra.mxu0 %v959
  %1039 = vmatprep.subr.mxu0 %v962
  %1040 = vmatpush1.xpose.msra.mxu0 %v961
  %1041 = vmatprep.subr.mxu0 %v964
  %1042 = vmatpush1.xpose.msra.mxu0 %v963
  %1043 = vmatprep.subr.mxu0 %v966
  %1044 = vmatpush1.xpose.msra.mxu0 %v965
  %1045 = vmatprep.subr.mxu0 %v968
  %1046 = vmatpush1.xpose.msra.mxu0 %v967
  %1047 = vmatprep.subr.mxu0 %v970
  %1048 = vmatpush1.xpose.msra.mxu0 %v969
  %1049 = vmatprep.subr.mxu0 %v972
  %1050 = vmatpush1.xpose.msra.mxu0 %v971
  %1051 = vmatprep.subr.mxu0 %v974
  %1052 = vmatpush1.xpose.msra.mxu0 %v973
  %1053 = vmatprep.mubr.f32.mxu0 %v986
  %1054 = vmatmul.mubr.f32.gmra.mrb[0].mxu0 %v982
  %v1055 = vpop.f32.mrb[0].mxu0
  %v1056 = vadd.f32 %v977, %v1055
  %v1057 = vpop.f32.mrb[0].mxu0
  %v1058 = vadd.f32 %v977, %v1057
  %1059 = vdwg.mxu0
  %v1062 = vcombine.low %v1056, %v1058
  %v1064 = vunpack.c.l.s4 1966171168
  %v1065 = vunpack.c.0.s8 %v1064
  %v1066 = vlaneseq
  %v1067 = vshrl.u32 %v1066, 7
  %v1068 = vsub.s32 %v1065, %v1067
  %v1069 = vrot.slane %v1062, %v1068
  %v1071 = vunpack.c.l.s4 1966171168
  %v1072 = vunpack.c.0.s8 %v1071
  %v1073 = vlaneseq
  %v1074 = vshrl.u32 %v1073, 7
  %v1075 = vsub.s32 %v1072, %v1074
  %v1076 = vrot.slane %v1069, %v1075
  %v1078 = vlaneseq
  %vm1079 = vcmp.ge.s32.totalorder %v1078, 0
  %vm1080 = vcmp.lt.s32.totalorder %v1078, 256
  %vm1081 = vmand %vm1079, %vm1080
  %1082 = vst.msk [vmem:[%s7] sm:$0x3] %vm1081, %v1076
  // Predicated region
  $region30: #{critic_forward.1} parent=0 // pred_check
    _
  $region31: #{critic_forward.1} parent=0 // pred_check_branch
    %1084 = sbr.rel (0) target = $region33
  $region32: #{critic_forward.1} parent=0 // pred_region
    _
  $region33: #{critic_forward.1} parent=0 // pred_fallthru
    _
  // Predicated region
  $region34: #{critic_forward.1} parent=0 // pred_check
    _
  $region35: #{critic_forward.1} parent=0 // pred_check_branch
    %1086 = sbr.rel (0) target = $region37
  $region36: #{critic_forward.1} parent=0 // pred_region
    _
  $region37: #{critic_forward.1} parent=0 // pred_fallthru
    _

</llo_original>
